<compile_context>
chip_gen: v7x
topology: tpu7x:2x2x1
jax: 0.10.0
libtpu: 0.0.40
codegen_flags: <defaults>
</compile_context>

<pallas_src>
import jax
import jax.numpy as jnp
from jax.experimental import pallas as pl
from jax.experimental.pallas import tpu as pltpu

_LANES = 128
_TINY_ELEMS = 8 * _LANES                 # below ~one f32 vreg: skip Pallas
_TARGET_TILE_BYTES = 2 * 1024 * 1024     # ~2 MiB/tile -> 6 live tiles ~= 12 MiB


def _add_kernel(a_ref, b_ref, o_ref):
    # Pure elementwise hot path on the VPU over one lane-dense VMEM tile.
    o_ref[...] = a_ref[...] + b_ref[...]


def _pick_cols(n):
    """Largest lane-dense column width (multiple of 128) that divides n."""
    for c in (2048, 1024, 512, 256, 128):
        if n % c == 0:
            return c
    return None


def test_forward(a: jax.Array, b: jax.Array) -> jax.Array:
    """Pallas equivalent of Test()(inputA, inputB) == test_cpp.forward(a, b)."""
    assert a.shape == b.shape and a.dtype == b.dtype
    n = a.size
    cols = _pick_cols(n)

    # Tiny or lane-ragged shapes: a fused XLA add beats a pallas_call launch
    # on every TPU generation (and dodges the (8,128) tiling constraint).
    if n < _TINY_ELEMS or cols is None:
        return a + b

    rows = n // cols

    # Row-block sized to ~2 MiB per tile, rounded down to a multiple of 8
    # (sublane requirement); a block equal to the full row extent is also legal.
    itemsize = a.dtype.itemsize
    max_rows = max(8, (_TARGET_TILE_BYTES // (cols * itemsize)) // 8 * 8)
    block_rows = rows if rows <= max_rows else max_rows
    grid = (pl.cdiv(rows, block_rows),)

    a2 = a.reshape(rows, cols)
    b2 = b.reshape(rows, cols)

    spec = pl.BlockSpec((block_rows, cols), lambda i: (i, 0))

    out2 = pl.pallas_call(
        _add_kernel,
        out_shape=jax.ShapeDtypeStruct((rows, cols), a.dtype),
        grid=grid,
        in_specs=[spec, spec],
        out_specs=spec,
        compiler_params=pltpu.CompilerParams(
            dimension_semantics=("parallel",),
            vmem_limit_bytes=32 * 1024 * 1024,
        ),
    )(a2, b2)
    return out2.reshape(a.shape)


if __name__ == "__main__":
    key = jax.random.PRNGKey(0)
    k1, k2 = jax.random.split(key)

    # Module-consistent small input (elementwise op works on any shape).
    shape = (2, 4, 16, 16)  # 2048 elems -> flattened to a lane-dense (1, 2048) slab
    inputA = jax.random.normal(k1, shape, dtype=jnp.float32)
    inputB = jax.random.normal(k2, shape, dtype=jnp.float32)

    out = test_forward(inputA, inputB)
    jax.block_until_ready(out)
    assert out.shape == shape
    assert jnp.allclose(out, inputA + inputB, atol=1e-6), "mismatch vs reference"

    # Larger run exercising the multi-block pipelined grid (4 grid steps of
    # 256x2048 f32 tiles, double-buffered DMA overlapped with compute).
    k3, k4 = jax.random.split(k2)
    bigA = jax.random.normal(k3, (2048, 1024), dtype=jnp.float32)
    bigB = jax.random.normal(k4, (2048, 1024), dtype=jnp.float32)
    big = test_forward(bigA, bigB)
    jax.block_until_ready(big)
    assert jnp.allclose(big, bigA + bigB, atol=1e-6), "mismatch vs reference (big)"

    # Literal example from the module file: [1,2,3] + [4,5,6] (tiny -> fused path).
    xv = jnp.array([1.0, 2.0, 3.0], dtype=jnp.float32)
    yv = jnp.array([4.0, 5.0, 6.0], dtype=jnp.float32)
    small = test_forward(xv, yv)
    jax.block_until_ready(small)
    assert jnp.allclose(small, jnp.array([5.0, 7.0, 9.0], dtype=jnp.float32))

    print("KERNEL_OK")
</pallas_src>

<mosaic_0001>
module attributes {stable_mosaic.version = 11 : i64} {
  func.func @_add_kernel(%arg0: i32, %arg1: memref<1x2048xf32, #tpu.memory_space<vmem>>, %arg2: memref<1x2048xf32, #tpu.memory_space<vmem>>, %arg3: memref<1x2048xf32, #tpu.memory_space<vmem>>) attributes {dimension_semantics = [#tpu.dimension_semantics<parallel>], iteration_bounds = array<i64: 1>, scalar_prefetch = 0 : i64, scratch_operands = 0 : i64, tpu.core_type = #tpu.core_type<tc>, window_params = [{transform_indices = @transform_0, window_bounds = array<i64: 1, 2048>}, {transform_indices = @transform_1, window_bounds = array<i64: 1, 2048>}, {transform_indices = @transform_2, window_bounds = array<i64: 1, 2048>}]} {
    %c0 = arith.constant 0 : index
    %c0_0 = arith.constant 0 : index
    %0 = vector.load %arg1[%c0, %c0_0] : memref<1x2048xf32, #tpu.memory_space<vmem>>, vector<1x2048xf32>
    %c0_1 = arith.constant 0 : index
    %c0_2 = arith.constant 0 : index
    %1 = vector.load %arg2[%c0_1, %c0_2] : memref<1x2048xf32, #tpu.memory_space<vmem>>, vector<1x2048xf32>
    %2 = arith.addf %0, %1 : vector<1x2048xf32>
    %c0_3 = arith.constant 0 : index
    %c0_4 = arith.constant 0 : index
    %3 = vector.load %arg3[%c0_3, %c0_4] : memref<1x2048xf32, #tpu.memory_space<vmem>>, vector<1x2048xf32>
    tpu.vector_store %arg3[%c0_3, %c0_4], %2 {strides = array<i32>} : memref<1x2048xf32, #tpu.memory_space<vmem>>, vector<1x2048xf32>,
    return
  }
  func.func @transform_0(%arg0: i32) -> (i32, i32) {
    %c0_i32 = arith.constant 0 : i32
    %c0_i32_0 = arith.constant 0 : i32
    return %arg0, %c0_i32 : i32, i32
  }
  func.func @transform_1(%arg0: i32) -> (i32, i32) {
    %c0_i32 = arith.constant 0 : i32
    %c0_i32_0 = arith.constant 0 : i32
    return %arg0, %c0_i32 : i32, i32
  }
  func.func @transform_2(%arg0: i32) -> (i32, i32) {
    %c0_i32 = arith.constant 0 : i32
    %c0_i32_0 = arith.constant 0 : i32
    return %arg0, %c0_i32 : i32, i32
  }
}

</mosaic_0001>

<llo_original>
// kernel: tpu_custom_call.1
$region0: #{tpu_custom_call.1}
  #allocation0 [shape = 'u32[]', space=smem, size = 0x4, offset = 0x4, fixed_abs, tag = 'smem constant byte address 0x4 - core index']
  #allocation1 [shape = 'u32[144,128]{1,0:T(1,128)}', space=vmem, size = 0x12000, scoped, tag = 'internal scratch']
  %s0 = inlined_call_operand.hbm [shape: f32[1,2048], index: 0, kind: input, shape index: {}]
  %s1 = inlined_call_operand.hbm [shape: f32[1,2048], index: 1, kind: input, shape index: {}]
  %s2 = inlined_call_operand.hbm [shape: f32[1,2048], index: 2, kind: output, shape index: {}]
  %s3 = sld [smem:[#allocation0]]
  $region26: #{tpu_custom_call.1} parent=0
    _
  %s5 = ssub.s32 1, %s3
  %s6 = scalar_select 0, %s5, %s3
  $region1: #{tpu_custom_call.1} parent=0
    #allocation2 [shape = 'u8[8192]{0}', space=vmem, size = 0x2000, scoped, tag = 'input window, operand 0, single buffered']
    #allocation3 [shape = 's32[1]{0}', space=sflag, size = 0x4, scoped, tag = 'scoped memory for tpu_custom_call.1']
    #allocation4 [shape = 's32[1]{0}', space=sflag, size = 0x4, scoped, tag = 'scoped memory for tpu_custom_call.1']
    #allocation5 [shape = 'u8[8192]{0}', space=vmem, size = 0x2000, scoped, tag = 'input window, operand 1, single buffered']
    #allocation6 [shape = 's32[1]{0}', space=sflag, size = 0x4, scoped, tag = 'scoped memory for tpu_custom_call.1']
    #allocation7 [shape = 'u8[8192]{0}', space=vmem, size = 0x2000, scoped, tag = 'output window, operand 0, single buffered']
    %7 = vsyncpa [#allocation3], 0
    %8 = vsyncpa [#allocation6], 0
    %9 = vsyncpa [#allocation4], 0
    // Predicated region
    $region2: #{tpu_custom_call.1} parent=1 // pred_check
      _
    $region3: #{tpu_custom_call.1} parent=1 // pred_check_branch
      %11 = sbr.rel (0) target = $region5
    $region4: #{tpu_custom_call.1} parent=1 // pred_region
      %s13 = ssub.s32 256, 256
      %14 = vsyncadd [#allocation3], %s13
      %s16 = sshll.u32 [#allocation2], 4
      %s17 = int_to_ptr.vmem [resolvable:$true] %s16
      %19 = dma.hbm_to_vmem [thread:$0]  %s0, 256, %s17, [#allocation3]
    $region5: #{tpu_custom_call.1} parent=1 // pred_fallthru
      _
    // Predicated region
    $region6: #{tpu_custom_call.1} parent=1 // pred_check
      _
    $region7: #{tpu_custom_call.1} parent=1 // pred_check_branch
      %21 = sbr.rel (0) target = $region9
    $region8: #{tpu_custom_call.1} parent=1 // pred_region
      %s23 = ssub.s32 256, 256
      %24 = vsyncadd [#allocation6], %s23
      %s26 = sshll.u32 [#allocation5], 4
      %s27 = int_to_ptr.vmem [resolvable:$true] %s26
      %29 = dma.hbm_to_vmem [thread:$0]  %s1, 256, %s27, [#allocation6]
    $region9: #{tpu_custom_call.1} parent=1 // pred_fallthru
      _
    // Predicated region
    $region10: #{tpu_custom_call.1} parent=1 // pred_check
      _
    $region11: #{tpu_custom_call.1} parent=1 // pred_check_branch
      %31 = sbr.rel (0) target = $region13
    $region12: #{tpu_custom_call.1} parent=1 // pred_region
      %32 = dma.done [#allocation3], 256
    $region13: #{tpu_custom_call.1} parent=1 // pred_fallthru
      _
    // Predicated region
    $region14: #{tpu_custom_call.1} parent=1 // pred_check
      _
    $region15: #{tpu_custom_call.1} parent=1 // pred_check_branch
      %34 = sbr.rel (0) target = $region17
    $region16: #{tpu_custom_call.1} parent=1 // pred_region
      %35 = dma.done [#allocation6], 256
    $region17: #{tpu_custom_call.1} parent=1 // pred_fallthru
      _
    %v36 = vld [vmem:[#allocation2] sm:$0xff]
    %v37 = vld [vmem:[#allocation2 + $0x8] sm:$0xff]
    %v38 = vld [vmem:[#allocation5] sm:$0xff]
    %v39 = vld [vmem:[#allocation5 + $0x8] sm:$0xff]
    %v40 = vadd.f32 %v36, %v38
    %v41 = vadd.f32 %v37, %v39
    %42 = vst [vmem:[#allocation7] sm:$0xff] %v40
    %43 = vst [vmem:[#allocation7 + $0x8] sm:$0xff] %v41
    // Predicated region
    $region18: #{tpu_custom_call.1} parent=1 // pred_check
      _
    $region19: #{tpu_custom_call.1} parent=1 // pred_check_branch
      %45 = sbr.rel (0) target = $region21
    $region20: #{tpu_custom_call.1} parent=1 // pred_region
      %s47 = ssub.s32 256, 256
      %48 = vsyncadd [#allocation4], %s47
      %s50 = sshll.u32 [#allocation7], 4
      %s51 = int_to_ptr.vmem [resolvable:$true] %s50
      %53 = dma.vmem_to_hbm [thread:$0]  %s51, 256, %s2, [#allocation4]
    $region21: #{tpu_custom_call.1} parent=1 // pred_fallthru
      _
    // Predicated region
    $region22: #{tpu_custom_call.1} parent=1 // pred_check
      _
    $region23: #{tpu_custom_call.1} parent=1 // pred_check_branch
      %55 = sbr.rel (0) target = $region25
    $region24: #{tpu_custom_call.1} parent=1 // pred_region
      %56 = dma.done [#allocation4], 256
    $region25: #{tpu_custom_call.1} parent=1 // pred_fallthru
      _
    %57 = vsyncpa [#allocation3], 1
    %58 = vsyncpa [#allocation6], 1
    %59 = vsyncpa [#allocation4], 1

</llo_original>
